<compile_context>
chip_gen: v7x
topology: tpu7x:2x2x1
jax: 0.10.0
libtpu: 0.0.40
codegen_flags: <defaults>
</compile_context>

<pallas_src>
import jax
import jax.numpy as jnp
from jax.experimental import pallas as pl
from jax.experimental.pallas import tpu as pltpu


def plus_linear_kernel(x_ref, w_ref, b_ref, o_ref):
    """Fused Plus(Linear): out = x @ W_t + b + x for one (TB, H) batch tile."""
    x = x_ref[...]                                   # (TB, H) f32 residual input
    # bf16 operands, f32 accumulation on the MXU.
    y = jnp.dot(
        x.astype(jnp.bfloat16),
        w_ref[...],                                  # (H, H) bf16, VMEM-resident
        preferred_element_type=jnp.float32,
    )
    # Bias + residual (the "Plus") epilogue in f32, then cast to output dtype.
    o_ref[...] = (y + b_ref[...] + x).astype(o_ref.dtype)


def _pick_batch_tile(B: int) -> int:
    """Largest lane/sublane-friendly batch tile that evenly divides B."""
    for tb in (1024, 512, 256, 128, 64, 32, 16, 8):
        if B % tb == 0:
            return tb
    return B  # fall back to full-extent block (always legal)


def plus_forward(x, w_t, b):
    """Plus(nn.Linear(H, H), plus_idx=0)(x)  ==  x @ w_t + b + x.

    x   : (B, H) float32
    w_t : (H, H) float (already transposed so out = x @ w_t); cast to bf16 here
    b   : (1, H) float32
    """
    B, H = x.shape
    TB = _pick_batch_tile(B)
    w_bf16 = w_t.astype(jnp.bfloat16)

    cost = pl.CostEstimate(
        flops=2 * B * H * H,
        transcendentals=0,
        bytes_accessed=4 * B * H      # x in
        + 2 * H * H                   # w_t in (bf16)
        + 4 * H                       # b in
        + 4 * B * H,                  # out
    )

    return pl.pallas_call(
        plus_linear_kernel,
        out_shape=jax.ShapeDtypeStruct((B, H), x.dtype),
        grid_spec=pl.GridSpec(
            grid=(B // TB,),
            in_specs=[
                pl.BlockSpec((TB, H), lambda i: (i, 0)),   # x tile (pipelined)
                pl.BlockSpec((H, H), lambda i: (0, 0)),    # W_t (resident)
                pl.BlockSpec((1, H), lambda i: (0, 0)),    # b   (resident)
            ],
            out_specs=pl.BlockSpec((TB, H), lambda i: (i, 0)),
        ),
        compiler_params=pltpu.CompilerParams(
            dimension_semantics=("parallel",),
        ),
        cost_estimate=cost,
    )(x, w_bf16, b)


if __name__ == "__main__":
    # Small but tile-able shapes: H = 128 keeps the lane axis fully dense,
    # B = 256 gives a 2-step batch grid so pipelining / parallel semantics
    # are actually exercised.
    B, H = 256, 128

    key = jax.random.PRNGKey(0)
    kx, kw, kb = jax.random.split(key, 3)

    # Deterministic synthetic parameters for F = nn.Linear(H, H)
    x = jax.random.normal(kx, (B, H), dtype=jnp.float32)
    w = jax.random.normal(kw, (H, H), dtype=jnp.float32) * 0.02   # torch weight (out, in)
    b = jax.random.normal(kb, (1, H), dtype=jnp.float32) * 0.02

    w_t = w.T  # pre-transpose so kernel computes x @ w_t == x @ W^T (torch Linear)

    out = plus_forward(x, w_t, b)
    out = jax.block_until_ready(out)

    # Pure-JAX reference of Plus(nn.Linear)(x) = Linear(x) + x, with the same
    # bf16-operand / f32-accumulation matmul the kernel performs.
    ref = (
        jnp.dot(
            x.astype(jnp.bfloat16),
            w_t.astype(jnp.bfloat16),
            preferred_element_type=jnp.float32,
        )
        + b
        + x
    )
    assert out.shape == (B, H)
    assert jnp.allclose(out, ref, atol=1e-3, rtol=1e-3), "mismatch vs reference"

    print("KERNEL_OK")
</pallas_src>

<mosaic_0001>
module attributes {stable_mosaic.version = 11 : i64} {
  func.func @plus_linear_kernel(%arg0: i32, %arg1: memref<256x128xf32, #tpu.memory_space<vmem>>, %arg2: memref<128x128xbf16, #tpu.memory_space<vmem>>, %arg3: memref<1x128xf32, #tpu.memory_space<vmem>>, %arg4: memref<256x128xf32, #tpu.memory_space<vmem>>) attributes {dimension_semantics = [#tpu.dimension_semantics<parallel>], iteration_bounds = array<i64: 1>, scalar_prefetch = 0 : i64, scratch_operands = 0 : i64, tpu.core_type = #tpu.core_type<tc>, window_params = [{transform_indices = @transform_0, window_bounds = array<i64: 256, 128>}, {pipeline_mode = #tpu.pipeline_mode<synchronous>, transform_indices = @transform_1, window_bounds = array<i64: 128, 128>}, {pipeline_mode = #tpu.pipeline_mode<synchronous>, transform_indices = @transform_2, window_bounds = array<i64: 1, 128>}, {transform_indices = @transform_3, window_bounds = array<i64: 256, 128>}]} {
    %c0 = arith.constant 0 : index
    %c0_0 = arith.constant 0 : index
    %0 = vector.load %arg1[%c0, %c0_0] : memref<256x128xf32, #tpu.memory_space<vmem>>, vector<256x128xf32>
    %1 = arith.truncf %0 : vector<256x128xf32> to vector<256x128xbf16>
    %c0_1 = arith.constant 0 : index
    %c0_2 = arith.constant 0 : index
    %2 = vector.load %arg2[%c0_1, %c0_2] : memref<128x128xbf16, #tpu.memory_space<vmem>>, vector<128x128xbf16>
    %cst = arith.constant dense<0.000000e+00> : vector<256x128xf32>
    %3 = tpu.matmul %1, %2, %cst {dimension_numbers = #tpu.dot_dimension_numbers<[1], [0], [0], [1], [0, 0, 1, 1], [], []>} : vector<256x128xbf16>, vector<128x128xbf16>, vector<256x128xf32> -> vector<256x128xf32>
    %c0_3 = arith.constant 0 : index
    %c0_4 = arith.constant 0 : index
    %4 = vector.load %arg3[%c0_3, %c0_4] : memref<1x128xf32, #tpu.memory_space<vmem>>, vector<1x128xf32>
    %5 = vector.broadcast %4 : vector<1x128xf32> to vector<256x128xf32>
    %6 = arith.addf %3, %5 : vector<256x128xf32>
    %7 = arith.addf %6, %0 : vector<256x128xf32>
    %c0_5 = arith.constant 0 : index
    %c0_6 = arith.constant 0 : index
    %8 = vector.load %arg4[%c0_5, %c0_6] : memref<256x128xf32, #tpu.memory_space<vmem>>, vector<256x128xf32>
    tpu.vector_store %arg4[%c0_5, %c0_6], %7 {strides = array<i32>} : memref<256x128xf32, #tpu.memory_space<vmem>>, vector<256x128xf32>,
    return
  }
  func.func @transform_0(%arg0: i32) -> (i32, i32) {
    %c0_i32 = arith.constant 0 : i32
    %c0_i32_0 = arith.constant 0 : i32
    return %arg0, %c0_i32 : i32, i32
  }
  func.func @transform_1(%arg0: i32) -> (i32, i32) {
    %c0_i32 = arith.constant 0 : i32
    %c0_i32_0 = arith.constant 0 : i32
    %c0_i32_1 = arith.constant 0 : i32
    return %c0_i32, %c0_i32_0 : i32, i32
  }
  func.func @transform_2(%arg0: i32) -> (i32, i32) {
    %c0_i32 = arith.constant 0 : i32
    %c0_i32_0 = arith.constant 0 : i32
    %c0_i32_1 = arith.constant 0 : i32
    return %c0_i32, %c0_i32_0 : i32, i32
  }
  func.func @transform_3(%arg0: i32) -> (i32, i32) {
    %c0_i32 = arith.constant 0 : i32
    %c0_i32_0 = arith.constant 0 : i32
    return %arg0, %c0_i32 : i32, i32
  }
}

</mosaic_0001>

<llo_original>
// kernel: tpu_custom_call.1
$region0: #{tpu_custom_call.1}
  #allocation0 [shape = 'u32[]', space=smem, size = 0x4, offset = 0x4, fixed_abs, tag = 'smem constant byte address 0x4 - core index']
  #allocation1 [shape = 'u32[144,128]{1,0:T(1,128)}', space=vmem, size = 0x12000, scoped, tag = 'internal scratch']
  %s0 = inlined_call_operand.hbm [shape: f32[256,128], index: 0, kind: input, shape index: {}]
  %s1 = inlined_call_operand.hbm [shape: bf16[128,128], index: 1, kind: input, shape index: {}]
  %s2 = inlined_call_operand.vmem [shape: f32[1,128], index: 2, kind: input, shape index: {}]
  %s3 = inlined_call_operand.hbm [shape: f32[256,128], index: 3, kind: output, shape index: {}]
  %s4 = sld [smem:[#allocation0]]
  $region30: #{tpu_custom_call.1} parent=0
    _
  %s6 = ssub.s32 1, %s4
  %s7 = scalar_select 0, %s6, %s4
  $region1: #{tpu_custom_call.1} parent=0
    #allocation2 [shape = 'u8[131072]{0}', space=vmem, size = 0x20000, scoped, tag = 'input window, operand 0, single buffered']
    #allocation3 [shape = 's32[1]{0}', space=sflag, size = 0x4, scoped, tag = 'scoped memory for tpu_custom_call.1']
    #allocation4 [shape = 's32[1]{0}', space=sflag, size = 0x4, scoped, tag = 'scoped memory for tpu_custom_call.1']
    #allocation5 [shape = 'u8[32768]{0}', space=vmem, size = 0x8000, scoped, tag = 'input window, operand 1, single buffered']
    #allocation6 [shape = 's32[1]{0}', space=sflag, size = 0x4, scoped, tag = 'scoped memory for tpu_custom_call.1']
    #allocation7 [shape = 'u8[131072]{0}', space=vmem, size = 0x20000, scoped, tag = 'output window, operand 0, single buffered']
    %8 = vsyncpa [#allocation3], 0
    %9 = vsyncpa [#allocation6], 0
    %10 = vsyncpa [#allocation4], 0
    // Predicated region
    $region2: #{tpu_custom_call.1} parent=1 // pred_check
      _
    $region3: #{tpu_custom_call.1} parent=1 // pred_check_branch
      %12 = sbr.rel (0) target = $region5
    $region4: #{tpu_custom_call.1} parent=1 // pred_region
      %s14 = ssub.s32 4096, 4096
      %15 = vsyncadd [#allocation3], %s14
      %s16 = sshll.u32 [#allocation2], 4
      %s17 = int_to_ptr.vmem [resolvable:$true] %s16
      %22 = dma.hbm_to_vmem [thread:$0]  %s0, 4096, %s17, [#allocation3], 128, 128, 8
    $region5: #{tpu_custom_call.1} parent=1 // pred_fallthru
      _
    // Predicated region
    $region6: #{tpu_custom_call.1} parent=1 // pred_check
      _
    $region7: #{tpu_custom_call.1} parent=1 // pred_check_branch
      %24 = sbr.rel (0) target = $region9
    $region8: #{tpu_custom_call.1} parent=1 // pred_region
      %s26 = ssub.s32 1024, 1024
      %27 = vsyncadd [#allocation6], %s26
      %s28 = sshll.u32 [#allocation5], 4
      %s29 = int_to_ptr.vmem [resolvable:$true] %s28
      %34 = dma.hbm_to_vmem [thread:$0]  %s1, 1024, %s29, [#allocation6], 64, 64, 4
    $region9: #{tpu_custom_call.1} parent=1 // pred_fallthru
      _
    // Predicated region
    $region10: #{tpu_custom_call.1} parent=1 // pred_check
      _
    $region11: #{tpu_custom_call.1} parent=1 // pred_check_branch
      %36 = sbr.rel (0) target = $region13
    $region12: #{tpu_custom_call.1} parent=1 // pred_region
      _
    $region13: #{tpu_custom_call.1} parent=1 // pred_fallthru
      _
    // Predicated region
    $region14: #{tpu_custom_call.1} parent=1 // pred_check
      _
    $region15: #{tpu_custom_call.1} parent=1 // pred_check_branch
      %38 = sbr.rel (0) target = $region17
    $region16: #{tpu_custom_call.1} parent=1 // pred_region
      %39 = dma.done [#allocation3], 4096
    $region17: #{tpu_custom_call.1} parent=1 // pred_fallthru
      _
    // Predicated region
    $region18: #{tpu_custom_call.1} parent=1 // pred_check
      _
    $region19: #{tpu_custom_call.1} parent=1 // pred_check_branch
      %41 = sbr.rel (0) target = $region21
    $region20: #{tpu_custom_call.1} parent=1 // pred_region
      %42 = dma.done [#allocation6], 1024
    $region21: #{tpu_custom_call.1} parent=1 // pred_fallthru
      _
    %v44 = vld [vmem:[#allocation2] sm:$0xff]
    %v45 = vld [vmem:[#allocation2 + $0x8] sm:$0xff]
    %v46 = vld [vmem:[#allocation2 + $0x10] sm:$0xff]
    %v47 = vld [vmem:[#allocation2 + $0x18] sm:$0xff]
    %v48 = vld [vmem:[#allocation2 + $0x20] sm:$0xff]
    %v49 = vld [vmem:[#allocation2 + $0x28] sm:$0xff]
    %v50 = vld [vmem:[#allocation2 + $0x30] sm:$0xff]
    %v51 = vld [vmem:[#allocation2 + $0x38] sm:$0xff]
    %v52 = vld [vmem:[#allocation2 + $0x40] sm:$0xff]
    %v53 = vld [vmem:[#allocation2 + $0x48] sm:$0xff]
    %v54 = vld [vmem:[#allocation2 + $0x50] sm:$0xff]
    %v55 = vld [vmem:[#allocation2 + $0x58] sm:$0xff]
    %v56 = vld [vmem:[#allocation2 + $0x60] sm:$0xff]
    %v57 = vld [vmem:[#allocation2 + $0x68] sm:$0xff]
    %v58 = vld [vmem:[#allocation2 + $0x70] sm:$0xff]
    %v59 = vld [vmem:[#allocation2 + $0x78] sm:$0xff]
    %v60 = vld [vmem:[#allocation2 + $0x80] sm:$0xff]
    %v61 = vld [vmem:[#allocation2 + $0x88] sm:$0xff]
    %v62 = vld [vmem:[#allocation2 + $0x90] sm:$0xff]
    %v63 = vld [vmem:[#allocation2 + $0x98] sm:$0xff]
    %v64 = vld [vmem:[#allocation2 + $0xa0] sm:$0xff]
    %v65 = vld [vmem:[#allocation2 + $0xa8] sm:$0xff]
    %v66 = vld [vmem:[#allocation2 + $0xb0] sm:$0xff]
    %v67 = vld [vmem:[#allocation2 + $0xb8] sm:$0xff]
    %v68 = vld [vmem:[#allocation2 + $0xc0] sm:$0xff]
    %v69 = vld [vmem:[#allocation2 + $0xc8] sm:$0xff]
    %v70 = vld [vmem:[#allocation2 + $0xd0] sm:$0xff]
    %v71 = vld [vmem:[#allocation2 + $0xd8] sm:$0xff]
    %v72 = vld [vmem:[#allocation2 + $0xe0] sm:$0xff]
    %v73 = vld [vmem:[#allocation2 + $0xe8] sm:$0xff]
    %v74 = vld [vmem:[#allocation2 + $0xf0] sm:$0xff]
    %v75 = vld [vmem:[#allocation2 + $0xf8] sm:$0xff]
    %v76 = vpack.c.bf16 %v45, %v44
    %v77 = vpack.c.bf16 %v47, %v46
    %v78 = vpack.c.bf16 %v49, %v48
    %v79 = vpack.c.bf16 %v51, %v50
    %v80 = vpack.c.bf16 %v53, %v52
    %v81 = vpack.c.bf16 %v55, %v54
    %v82 = vpack.c.bf16 %v57, %v56
    %v83 = vpack.c.bf16 %v59, %v58
    %v84 = vpack.c.bf16 %v61, %v60
    %v85 = vpack.c.bf16 %v63, %v62
    %v86 = vpack.c.bf16 %v65, %v64
    %v87 = vpack.c.bf16 %v67, %v66
    %v88 = vpack.c.bf16 %v69, %v68
    %v89 = vpack.c.bf16 %v71, %v70
    %v90 = vpack.c.bf16 %v73, %v72
    %v91 = vpack.c.bf16 %v75, %v74
    %v92 = vld [vmem:[#allocation5] sm:$0xf]
    %v93 = vld [vmem:[#allocation5 + $0x4] sm:$0xf]
    %v94 = vld [vmem:[#allocation5 + $0x8] sm:$0xf]
    %v95 = vld [vmem:[#allocation5 + $0xc] sm:$0xf]
    %v96 = vld [vmem:[#allocation5 + $0x10] sm:$0xf]
    %v97 = vld [vmem:[#allocation5 + $0x14] sm:$0xf]
    %v98 = vld [vmem:[#allocation5 + $0x18] sm:$0xf]
    %v99 = vld [vmem:[#allocation5 + $0x1c] sm:$0xf]
    %v100 = vld [vmem:[#allocation5 + $0x20] sm:$0xf]
    %v101 = vld [vmem:[#allocation5 + $0x24] sm:$0xf]
    %v102 = vld [vmem:[#allocation5 + $0x28] sm:$0xf]
    %v103 = vld [vmem:[#allocation5 + $0x2c] sm:$0xf]
    %v104 = vld [vmem:[#allocation5 + $0x30] sm:$0xf]
    %v105 = vld [vmem:[#allocation5 + $0x34] sm:$0xf]
    %v106 = vld [vmem:[#allocation5 + $0x38] sm:$0xf]
    %v107 = vld [vmem:[#allocation5 + $0x3c] sm:$0xf]
    %v108 = vld [vmem:[%s2] sm:$0x1]
    %v110 = vlaneseq
    %v111 = vshrl.u32 %v110, 7
    %v112 = vsub.s32 0, %v111
    %v113 = vrot.slane %v108, %v112
    %v131 = vunpack.c.l.b16 %v92
    %v132 = vunpack.c.l.b16 %v93
    %v133 = vunpack.c.l.b16 %v94
    %v134 = vunpack.c.l.b16 %v95
    %v135 = vunpack.c.l.b16 %v96
    %v136 = vunpack.c.l.b16 %v97
    %v137 = vunpack.c.l.b16 %v98
    %v138 = vunpack.c.l.b16 %v99
    %v139 = vunpack.c.l.b16 %v100
    %v140 = vunpack.c.l.b16 %v101
    %v141 = vunpack.c.l.b16 %v102
    %v142 = vunpack.c.l.b16 %v103
    %v143 = vunpack.c.l.b16 %v104
    %v144 = vunpack.c.l.b16 %v105
    %v145 = vunpack.c.l.b16 %v106
    %v146 = vunpack.c.l.b16 %v107
    %v147 = vpack.c.b16 %v132, %v131
    %v148 = vpack.c.b16 %v134, %v133
    %v149 = vpack.c.b16 %v136, %v135
    %v150 = vpack.c.b16 %v138, %v137
    %v151 = vpack.c.b16 %v140, %v139
    %v152 = vpack.c.b16 %v142, %v141
    %v153 = vpack.c.b16 %v144, %v143
    %v154 = vpack.c.b16 %v146, %v145
    %163 = vmatprep.subr.bf16.mxu0 0
    %164 = vmatpush1.bf16.msra.mxu0 %v147
    %165 = vmatprep.subr.bf16.mxu0 0
    %166 = vmatpush1.bf16.msra.mxu0 %v148
    %167 = vmatprep.subr.bf16.mxu0 0
    %168 = vmatpush1.bf16.msra.mxu0 %v149
    %169 = vmatprep.subr.bf16.mxu0 0
    %170 = vmatpush1.bf16.msra.mxu0 %v150
    %171 = vmatprep.subr.bf16.mxu0 0
    %172 = vmatpush1.bf16.msra.mxu0 %v151
    %173 = vmatprep.subr.bf16.mxu0 0
    %174 = vmatpush1.bf16.msra.mxu0 %v152
    %175 = vmatprep.subr.bf16.mxu0 0
    %176 = vmatpush1.bf16.msra.mxu0 %v153
    %177 = vmatprep.subr.bf16.mxu0 0
    %178 = vmatpush1.bf16.msra.mxu0 %v154
    %179 = vmatprep.subr.bf16.mxu0 0
    %180 = vmatpush1.bf16.msra.mxu0 0
    %181 = vmatprep.subr.bf16.mxu0 0
    %182 = vmatpush1.bf16.msra.mxu0 0
    %183 = vmatprep.subr.bf16.mxu0 0
    %184 = vmatpush1.bf16.msra.mxu0 0
    %185 = vmatprep.subr.bf16.mxu0 0
    %186 = vmatpush1.bf16.msra.mxu0 0
    %187 = vmatprep.subr.bf16.mxu0 0
    %188 = vmatpush1.bf16.msra.mxu0 0
    %189 = vmatprep.subr.bf16.mxu0 0
    %190 = vmatpush1.bf16.msra.mxu0 0
    %191 = vmatprep.subr.bf16.mxu0 0
    %192 = vmatpush1.bf16.msra.mxu0 0
    %193 = vmatprep.subr.bf16.mxu0 0
    %194 = vmatpush1.bf16.msra.mxu0 0
    %195 = vmatprep.mubr.bf16.mxu0 0
    %196 = vmatmul.mubr.bf16.gmra.mrb[0].mxu0 %v76
    %v197 = vpop.f32.mrb[0].mxu0
    %v198 = vadd.f32 %v113, %v197
    %v199 = vpop.f32.mrb[0].mxu0
    %v200 = vpop.f32.mrb[0].mxu0
    %v201 = vadd.f32 %v113, %v200
    %v202 = vpop.f32.mrb[0].mxu0
    %203 = vmatprep.mubr.bf16.mxu0 0
    %204 = vmatmul.mubr.bf16.gmra.mrb[0].mxu0 %v77
    %v205 = vpop.f32.mrb[0].mxu0
    %v206 = vadd.f32 %v113, %v205
    %v207 = vpop.f32.mrb[0].mxu0
    %v208 = vpop.f32.mrb[0].mxu0
    %v209 = vadd.f32 %v113, %v208
    %v210 = vpop.f32.mrb[0].mxu0
    %211 = vmatprep.mubr.bf16.mxu0 0
    %212 = vmatmul.mubr.bf16.gmra.mrb[0].mxu0 %v78
    %v213 = vpop.f32.mrb[0].mxu0
    %v214 = vadd.f32 %v113, %v213
    %v215 = vpop.f32.mrb[0].mxu0
    %v216 = vpop.f32.mrb[0].mxu0
    %v217 = vadd.f32 %v113, %v216
    %v218 = vpop.f32.mrb[0].mxu0
    %219 = vmatprep.mubr.bf16.mxu0 0
    %220 = vmatmul.mubr.bf16.gmra.mrb[0].mxu0 %v79
    %v221 = vpop.f32.mrb[0].mxu0
    %v222 = vadd.f32 %v113, %v221
    %v223 = vpop.f32.mrb[0].mxu0
    %v224 = vpop.f32.mrb[0].mxu0
    %v225 = vadd.f32 %v113, %v224
    %v226 = vpop.f32.mrb[0].mxu0
    %227 = vmatprep.mubr.bf16.mxu0 0
    %228 = vmatmul.mubr.bf16.gmra.mrb[0].mxu0 %v80
    %v229 = vpop.f32.mrb[0].mxu0
    %v230 = vadd.f32 %v113, %v229
    %v231 = vpop.f32.mrb[0].mxu0
    %v232 = vpop.f32.mrb[0].mxu0
    %v233 = vadd.f32 %v113, %v232
    %v234 = vpop.f32.mrb[0].mxu0
    %235 = vmatprep.mubr.bf16.mxu0 0
    %236 = vmatmul.mubr.bf16.gmra.mrb[0].mxu0 %v81
    %v237 = vpop.f32.mrb[0].mxu0
    %v238 = vadd.f32 %v113, %v237
    %v239 = vpop.f32.mrb[0].mxu0
    %v240 = vpop.f32.mrb[0].mxu0
    %v241 = vadd.f32 %v113, %v240
    %v242 = vpop.f32.mrb[0].mxu0
    %243 = vmatprep.mubr.bf16.mxu0 0
    %244 = vmatmul.mubr.bf16.gmra.mrb[0].mxu0 %v82
    %v245 = vpop.f32.mrb[0].mxu0
    %v246 = vadd.f32 %v113, %v245
    %v247 = vpop.f32.mrb[0].mxu0
    %v248 = vpop.f32.mrb[0].mxu0
    %v249 = vadd.f32 %v113, %v248
    %v250 = vpop.f32.mrb[0].mxu0
    %251 = vmatprep.mubr.bf16.mxu0 0
    %252 = vmatmul.mubr.bf16.gmra.mrb[0].mxu0 %v83
    %v253 = vpop.f32.mrb[0].mxu0
    %v254 = vadd.f32 %v113, %v253
    %v255 = vpop.f32.mrb[0].mxu0
    %v256 = vpop.f32.mrb[0].mxu0
    %v257 = vadd.f32 %v113, %v256
    %v258 = vpop.f32.mrb[0].mxu0
    %259 = vmatprep.mubr.bf16.mxu0 0
    %260 = vmatmul.mubr.bf16.gmra.mrb[0].mxu0 %v84
    %v261 = vpop.f32.mrb[0].mxu0
    %v262 = vadd.f32 %v113, %v261
    %v263 = vpop.f32.mrb[0].mxu0
    %v264 = vpop.f32.mrb[0].mxu0
    %v265 = vadd.f32 %v113, %v264
    %v266 = vpop.f32.mrb[0].mxu0
    %267 = vmatprep.mubr.bf16.mxu0 0
    %268 = vmatmul.mubr.bf16.gmra.mrb[0].mxu0 %v85
    %v269 = vpop.f32.mrb[0].mxu0
    %v270 = vadd.f32 %v113, %v269
    %v271 = vpop.f32.mrb[0].mxu0
    %v272 = vpop.f32.mrb[0].mxu0
    %v273 = vadd.f32 %v113, %v272
    %v274 = vpop.f32.mrb[0].mxu0
    %275 = vmatprep.mubr.bf16.mxu0 0
    %276 = vmatmul.mubr.bf16.gmra.mrb[0].mxu0 %v86
    %v277 = vpop.f32.mrb[0].mxu0
    %v278 = vadd.f32 %v113, %v277
    %v279 = vpop.f32.mrb[0].mxu0
    %v280 = vpop.f32.mrb[0].mxu0
    %v281 = vadd.f32 %v113, %v280
    %v282 = vpop.f32.mrb[0].mxu0
    %283 = vmatprep.mubr.bf16.mxu0 0
    %284 = vmatmul.mubr.bf16.gmra.mrb[0].mxu0 %v87
    %v285 = vpop.f32.mrb[0].mxu0
    %v286 = vadd.f32 %v113, %v285
    %v287 = vpop.f32.mrb[0].mxu0
    %v288 = vpop.f32.mrb[0].mxu0
    %v289 = vadd.f32 %v113, %v288
    %v290 = vpop.f32.mrb[0].mxu0
    %291 = vmatprep.mubr.bf16.mxu0 0
    %292 = vmatmul.mubr.bf16.gmra.mrb[0].mxu0 %v88
    %v293 = vpop.f32.mrb[0].mxu0
    %v294 = vadd.f32 %v113, %v293
    %v295 = vpop.f32.mrb[0].mxu0
    %v296 = vpop.f32.mrb[0].mxu0
    %v297 = vadd.f32 %v113, %v296
    %v298 = vpop.f32.mrb[0].mxu0
    %299 = vmatprep.mubr.bf16.mxu0 0
    %300 = vmatmul.mubr.bf16.gmra.mrb[0].mxu0 %v89
    %v301 = vpop.f32.mrb[0].mxu0
    %v302 = vadd.f32 %v113, %v301
    %v303 = vpop.f32.mrb[0].mxu0
    %v304 = vpop.f32.mrb[0].mxu0
    %v305 = vadd.f32 %v113, %v304
    %v306 = vpop.f32.mrb[0].mxu0
    %307 = vmatprep.mubr.bf16.mxu0 0
    %308 = vmatmul.mubr.bf16.gmra.mrb[0].mxu0 %v90
    %v309 = vpop.f32.mrb[0].mxu0
    %v310 = vadd.f32 %v113, %v309
    %v311 = vpop.f32.mrb[0].mxu0
    %v312 = vpop.f32.mrb[0].mxu0
    %v313 = vadd.f32 %v113, %v312
    %v314 = vpop.f32.mrb[0].mxu0
    %315 = vmatprep.mubr.bf16.mxu0 0
    %316 = vmatmul.mubr.bf16.gmra.mrb[0].mxu0 %v91
    %v317 = vpop.f32.mrb[0].mxu0
    %v318 = vadd.f32 %v113, %v317
    %v319 = vpop.f32.mrb[0].mxu0
    %v320 = vpop.f32.mrb[0].mxu0
    %v321 = vadd.f32 %v113, %v320
    %v322 = vpop.f32.mrb[0].mxu0
    %323 = vdwg.mxu0
    %v324 = vadd.f32 %v198, %v44
    %v325 = vadd.f32 %v201, %v45
    %v326 = vadd.f32 %v206, %v46
    %v327 = vadd.f32 %v209, %v47
    %v328 = vadd.f32 %v214, %v48
    %v329 = vadd.f32 %v217, %v49
    %v330 = vadd.f32 %v222, %v50
    %v331 = vadd.f32 %v225, %v51
    %v332 = vadd.f32 %v230, %v52
    %v333 = vadd.f32 %v233, %v53
    %v334 = vadd.f32 %v238, %v54
    %v335 = vadd.f32 %v241, %v55
    %v336 = vadd.f32 %v246, %v56
    %v337 = vadd.f32 %v249, %v57
    %v338 = vadd.f32 %v254, %v58
    %v339 = vadd.f32 %v257, %v59
    %v340 = vadd.f32 %v262, %v60
    %v341 = vadd.f32 %v265, %v61
    %v342 = vadd.f32 %v270, %v62
    %v343 = vadd.f32 %v273, %v63
    %v344 = vadd.f32 %v278, %v64
    %v345 = vadd.f32 %v281, %v65
    %v346 = vadd.f32 %v286, %v66
    %v347 = vadd.f32 %v289, %v67
    %v348 = vadd.f32 %v294, %v68
    %v349 = vadd.f32 %v297, %v69
    %v350 = vadd.f32 %v302, %v70
    %v351 = vadd.f32 %v305, %v71
    %v352 = vadd.f32 %v310, %v72
    %v353 = vadd.f32 %v313, %v73
    %v354 = vadd.f32 %v318, %v74
    %v355 = vadd.f32 %v321, %v75
    %356 = vst [vmem:[#allocation7] sm:$0xff] %v324
    %357 = vst [vmem:[#allocation7 + $0x8] sm:$0xff] %v325
    %358 = vst [vmem:[#allocation7 + $0x10] sm:$0xff] %v326
    %359 = vst [vmem:[#allocation7 + $0x18] sm:$0xff] %v327
    %360 = vst [vmem:[#allocation7 + $0x20] sm:$0xff] %v328
    %361 = vst [vmem:[#allocation7 + $0x28] sm:$0xff] %v329
    %362 = vst [vmem:[#allocation7 + $0x30] sm:$0xff] %v330
    %363 = vst [vmem:[#allocation7 + $0x38] sm:$0xff] %v331
    %364 = vst [vmem:[#allocation7 + $0x40] sm:$0xff] %v332
    %365 = vst [vmem:[#allocation7 + $0x48] sm:$0xff] %v333
    %366 = vst [vmem:[#allocation7 + $0x50] sm:$0xff] %v334
    %367 = vst [vmem:[#allocation7 + $0x58] sm:$0xff] %v335
    %368 = vst [vmem:[#allocation7 + $0x60] sm:$0xff] %v336
    %369 = vst [vmem:[#allocation7 + $0x68] sm:$0xff] %v337
    %370 = vst [vmem:[#allocation7 + $0x70] sm:$0xff] %v338
    %371 = vst [vmem:[#allocation7 + $0x78] sm:$0xff] %v339
    %372 = vst [vmem:[#allocation7 + $0x80] sm:$0xff] %v340
    %373 = vst [vmem:[#allocation7 + $0x88] sm:$0xff] %v341
    %374 = vst [vmem:[#allocation7 + $0x90] sm:$0xff] %v342
    %375 = vst [vmem:[#allocation7 + $0x98] sm:$0xff] %v343
    %376 = vst [vmem:[#allocation7 + $0xa0] sm:$0xff] %v344
    %377 = vst [vmem:[#allocation7 + $0xa8] sm:$0xff] %v345
    %378 = vst [vmem:[#allocation7 + $0xb0] sm:$0xff] %v346
    %379 = vst [vmem:[#allocation7 + $0xb8] sm:$0xff] %v347
    %380 = vst [vmem:[#allocation7 + $0xc0] sm:$0xff] %v348
    %381 = vst [vmem:[#allocation7 + $0xc8] sm:$0xff] %v349
    %382 = vst [vmem:[#allocation7 + $0xd0] sm:$0xff] %v350
    %383 = vst [vmem:[#allocation7 + $0xd8] sm:$0xff] %v351
    %384 = vst [vmem:[#allocation7 + $0xe0] sm:$0xff] %v352
    %385 = vst [vmem:[#allocation7 + $0xe8] sm:$0xff] %v353
    %386 = vst [vmem:[#allocation7 + $0xf0] sm:$0xff] %v354
    %387 = vst [vmem:[#allocation7 + $0xf8] sm:$0xff] %v355
    // Predicated region
    $region22: #{tpu_custom_call.1} parent=1 // pred_check
      _
    $region23: #{tpu_custom_call.1} parent=1 // pred_check_branch
      %389 = sbr.rel (0) target = $region25
    $region24: #{tpu_custom_call.1} parent=1 // pred_region
      %s391 = ssub.s32 4096, 4096
      %392 = vsyncadd [#allocation4], %s391
      %s393 = sshll.u32 [#allocation7], 4
      %s394 = int_to_ptr.vmem [resolvable:$true] %s393
      %399 = dma.vmem_to_hbm [thread:$0]  %s394, 4096, %s3, [#allocation4], 128, 128, 8
    $region25: #{tpu_custom_call.1} parent=1 // pred_fallthru
      _
    // Predicated region
    $region26: #{tpu_custom_call.1} parent=1 // pred_check
      _
    $region27: #{tpu_custom_call.1} parent=1 // pred_check_branch
      %401 = sbr.rel (0) target = $region29
    $region28: #{tpu_custom_call.1} parent=1 // pred_region
      %402 = dma.done [#allocation4], 4096
    $region29: #{tpu_custom_call.1} parent=1 // pred_fallthru
      _
    %403 = vsyncpa [#allocation3], 1
    %404 = vsyncpa [#allocation6], 1
    %405 = vsyncpa [#allocation4], 1

</llo_original>
